<compile_context>
chip_gen: v7x
topology: tpu7x:2x2x1
jax: 0.10.0
libtpu: 0.0.40
codegen_flags: <defaults>
</compile_context>

<pallas_src>
import functools

import jax
import jax.numpy as jnp
from jax.experimental import pallas as pl
from jax.experimental.pallas import tpu as pltpu


def _mutan_kernel(xv_ref, xq_ref, wv_ref, bv_ref, wq_ref, bq_ref, o_ref, *, R, Mp):
    # xv_ref/xq_ref: (TN, H)
    # wv_ref/wq_ref: (H, R*Mp)   (rank-concatenated, zero-padded to Mp=128 per rank)
    # bv_ref/bq_ref: (1, R*Mp)
    # o_ref:         (TN, Mp)
    xv = xv_ref[...]
    xq = xq_ref[...]

    # One fused matmul per side; f32 accumulation on the MXU.
    hv = jnp.tanh(
        jnp.dot(xv, wv_ref[...], preferred_element_type=jnp.float32) + bv_ref[...]
    )
    hq = jnp.tanh(
        jnp.dot(xq, wq_ref[...], preferred_element_type=jnp.float32) + bq_ref[...]
    )
    prod = hv * hq  # (TN, R*Mp), f32

    # Rank sum via static slices on 128-lane boundaries (free, no XLU shuffle).
    acc = prod[:, 0:Mp]
    for i in range(1, R):
        acc = acc + prod[:, i * Mp:(i + 1) * Mp]

    o_ref[...] = jnp.tanh(acc).astype(o_ref.dtype)


def _round_up(x, m):
    return ((x + m - 1) // m) * m


def mutan_fusion2d(input_v, input_q, Wv, bv, Wq, bq, *, tn=512):
    """input_v/input_q: (B, Wh, H). Wv/Wq: (R, H, M) (already transposed from
    PyTorch's (M, H) Linear weight). bv/bq: (R, M). Returns (B, Wh, M)."""
    B, Wh, H = input_v.shape
    assert input_q.shape == (B, Wh, H)
    R, H2, M = Wv.shape
    assert H2 == H

    N = B * Wh
    Mp = _round_up(M, 128)  # lane-dense rank width (unmasked stores, aligned slices)

    # --- weight/bias prep: pad each rank's output to Mp, concat ranks along cols ---
    # (R, H, M) -> (R, H, Mp) -> (H, R, Mp) -> (H, R*Mp)
    def prep_w(W):
        Wp = jnp.pad(W, ((0, 0), (0, 0), (0, Mp - M)))
        return jnp.transpose(Wp, (1, 0, 2)).reshape(H, R * Mp)

    def prep_b(b):
        bp = jnp.pad(b, ((0, 0), (0, Mp - M)))
        return bp.reshape(1, R * Mp)

    Wv_cat = prep_w(Wv)
    Wq_cat = prep_w(Wq)
    bv_cat = prep_b(bv)
    bq_cat = prep_b(bq)

    # --- row tiling: clamp tile to the (8-rounded) problem size, pad N to a multiple ---
    tn_eff = min(tn, _round_up(N, 8))
    tn_eff = _round_up(tn_eff, 8)
    Np = _round_up(N, tn_eff)

    xv = input_v.reshape(N, H)
    xq = input_q.reshape(N, H)
    if Np != N:
        xv = jnp.pad(xv, ((0, Np - N), (0, 0)))
        xq = jnp.pad(xq, ((0, Np - N), (0, 0)))

    grid_spec = pltpu.PrefetchScalarGridSpec(
        num_scalar_prefetch=0,
        grid=(Np // tn_eff,),
        in_specs=[
            pl.BlockSpec((tn_eff, H), lambda n: (n, 0)),
            pl.BlockSpec((tn_eff, H), lambda n: (n, 0)),
            pl.BlockSpec((H, R * Mp), lambda n: (0, 0)),
            pl.BlockSpec((1, R * Mp), lambda n: (0, 0)),
            pl.BlockSpec((H, R * Mp), lambda n: (0, 0)),
            pl.BlockSpec((1, R * Mp), lambda n: (0, 0)),
        ],
        out_specs=pl.BlockSpec((tn_eff, Mp), lambda n: (n, 0)),
    )

    out = pl.pallas_call(
        functools.partial(_mutan_kernel, R=R, Mp=Mp),
        out_shape=jax.ShapeDtypeStruct((Np, Mp), input_v.dtype),
        grid_spec=grid_spec,
        compiler_params=pltpu.CompilerParams(
            dimension_semantics=("parallel",),
            vmem_limit_bytes=64 << 20,
        ),
    )(xv, xq, Wv_cat, bv_cat, Wq_cat, bq_cat)

    return out[:N, :M].reshape(B, Wh, M)


def _reference(input_v, input_q, Wv, bv, Wq, bq):
    B, Wh, H = input_v.shape
    R, _, M = Wv.shape
    xv = input_v.reshape(-1, H).astype(jnp.float32)
    xq = input_q.reshape(-1, H).astype(jnp.float32)
    acc = jnp.zeros((xv.shape[0], M), jnp.float32)
    for i in range(R):
        hv = jnp.tanh(xv @ Wv[i].astype(jnp.float32) + bv[i])
        hq = jnp.tanh(xq @ Wq[i].astype(jnp.float32) + bq[i])
        acc = acc + hv * hq
    return jnp.tanh(acc).reshape(B, Wh, M)


if __name__ == "__main__":
    # Small, deterministic synthetic configuration.
    B, Wh = 2, 8          # batch, weight_height (seq/spatial positions)
    dim_h, dim_mm, R = 32, 64, 3

    key = jax.random.PRNGKey(0)
    kv, kq, kwv, kbv, kwq, kbq = jax.random.split(key, 6)

    input_v = jax.random.normal(kv, (B, Wh, dim_h), dtype=jnp.float32)
    input_q = jax.random.normal(kq, (B, Wh, dim_h), dtype=jnp.float32)

    # nn.Linear(dim_h, dim_mm) weights: PyTorch stores (dim_mm, dim_h); we keep the
    # transposed (dim_h, dim_mm) layout so the kernel computes x @ W + b directly.
    scale = 1.0 / jnp.sqrt(dim_h)
    Wv = jax.random.uniform(kwv, (R, dim_h, dim_mm), jnp.float32, -scale, scale)
    bv = jax.random.uniform(kbv, (R, dim_mm), jnp.float32, -scale, scale)
    Wq = jax.random.uniform(kwq, (R, dim_h, dim_mm), jnp.float32, -scale, scale)
    bq = jax.random.uniform(kbq, (R, dim_mm), jnp.float32, -scale, scale)

    out = mutan_fusion2d(input_v, input_q, Wv, bv, Wq, bq)
    out = jax.block_until_ready(out)

    ref = _reference(input_v, input_q, Wv, bv, Wq, bq)
    assert out.shape == (B, Wh, dim_mm)
    assert jnp.allclose(out, ref, atol=1e-5, rtol=1e-5)

    print("KERNEL_OK")
</pallas_src>

<mosaic_0001>
module attributes {stable_mosaic.version = 11 : i64} {
  func.func @_mutan_kernel(%arg0: i32, %arg1: memref<16x32xf32, #tpu.memory_space<vmem>>, %arg2: memref<16x32xf32, #tpu.memory_space<vmem>>, %arg3: memref<32x384xf32, #tpu.memory_space<vmem>>, %arg4: memref<1x384xf32, #tpu.memory_space<vmem>>, %arg5: memref<32x384xf32, #tpu.memory_space<vmem>>, %arg6: memref<1x384xf32, #tpu.memory_space<vmem>>, %arg7: memref<16x128xf32, #tpu.memory_space<vmem>>) attributes {dimension_semantics = [#tpu.dimension_semantics<parallel>], iteration_bounds = array<i64: 1>, scalar_prefetch = 0 : i64, scratch_operands = 0 : i64, tpu.core_type = #tpu.core_type<tc>, window_params = [{transform_indices = @transform_0, window_bounds = array<i64: 16, 32>}, {transform_indices = @transform_1, window_bounds = array<i64: 16, 32>}, {pipeline_mode = #tpu.pipeline_mode<synchronous>, transform_indices = @transform_2, window_bounds = array<i64: 32, 384>}, {pipeline_mode = #tpu.pipeline_mode<synchronous>, transform_indices = @transform_3, window_bounds = array<i64: 1, 384>}, {pipeline_mode = #tpu.pipeline_mode<synchronous>, transform_indices = @transform_4, window_bounds = array<i64: 32, 384>}, {pipeline_mode = #tpu.pipeline_mode<synchronous>, transform_indices = @transform_5, window_bounds = array<i64: 1, 384>}, {transform_indices = @transform_6, window_bounds = array<i64: 16, 128>}]} {
    %c0 = arith.constant 0 : index
    %c0_0 = arith.constant 0 : index
    %0 = vector.load %arg1[%c0, %c0_0] : memref<16x32xf32, #tpu.memory_space<vmem>>, vector<16x32xf32>
    %c0_1 = arith.constant 0 : index
    %c0_2 = arith.constant 0 : index
    %1 = vector.load %arg2[%c0_1, %c0_2] : memref<16x32xf32, #tpu.memory_space<vmem>>, vector<16x32xf32>
    %c0_3 = arith.constant 0 : index
    %c0_4 = arith.constant 0 : index
    %2 = vector.load %arg3[%c0_3, %c0_4] : memref<32x384xf32, #tpu.memory_space<vmem>>, vector<32x384xf32>
    %cst = arith.constant dense<0.000000e+00> : vector<16x384xf32>
    %3 = tpu.matmul %0, %2, %cst {dimension_numbers = #tpu.dot_dimension_numbers<[1], [0], [0], [1], [0, 0, 1, 1], [], []>} : vector<16x32xf32>, vector<32x384xf32>, vector<16x384xf32> -> vector<16x384xf32>
    %c0_5 = arith.constant 0 : index
    %c0_6 = arith.constant 0 : index
    %4 = vector.load %arg4[%c0_5, %c0_6] : memref<1x384xf32, #tpu.memory_space<vmem>>, vector<1x384xf32>
    %5 = vector.broadcast %4 : vector<1x384xf32> to vector<16x384xf32>
    %6 = arith.addf %3, %5 : vector<16x384xf32>
    %7 = math.tanh %6 : vector<16x384xf32>
    %c0_7 = arith.constant 0 : index
    %c0_8 = arith.constant 0 : index
    %8 = vector.load %arg5[%c0_7, %c0_8] : memref<32x384xf32, #tpu.memory_space<vmem>>, vector<32x384xf32>
    %cst_9 = arith.constant dense<0.000000e+00> : vector<16x384xf32>
    %9 = tpu.matmul %1, %8, %cst_9 {dimension_numbers = #tpu.dot_dimension_numbers<[1], [0], [0], [1], [0, 0, 1, 1], [], []>} : vector<16x32xf32>, vector<32x384xf32>, vector<16x384xf32> -> vector<16x384xf32>
    %c0_10 = arith.constant 0 : index
    %c0_11 = arith.constant 0 : index
    %10 = vector.load %arg6[%c0_10, %c0_11] : memref<1x384xf32, #tpu.memory_space<vmem>>, vector<1x384xf32>
    %11 = vector.broadcast %10 : vector<1x384xf32> to vector<16x384xf32>
    %12 = arith.addf %9, %11 : vector<16x384xf32>
    %13 = math.tanh %12 : vector<16x384xf32>
    %14 = arith.mulf %7, %13 : vector<16x384xf32>
    %15 = vector.extract_strided_slice %14 {offsets = [0, 0], sizes = [16, 128], strides = [1, 1]} : vector<16x384xf32> to vector<16x128xf32>
    %16 = vector.extract_strided_slice %14 {offsets = [0, 128], sizes = [16, 128], strides = [1, 1]} : vector<16x384xf32> to vector<16x128xf32>
    %17 = arith.addf %15, %16 : vector<16x128xf32>
    %18 = vector.extract_strided_slice %14 {offsets = [0, 256], sizes = [16, 128], strides = [1, 1]} : vector<16x384xf32> to vector<16x128xf32>
    %19 = arith.addf %17, %18 : vector<16x128xf32>
    %20 = math.tanh %19 : vector<16x128xf32>
    %c0_12 = arith.constant 0 : index
    %c0_13 = arith.constant 0 : index
    %21 = vector.load %arg7[%c0_12, %c0_13] : memref<16x128xf32, #tpu.memory_space<vmem>>, vector<16x128xf32>
    tpu.vector_store %arg7[%c0_12, %c0_13], %20 {strides = array<i32>} : memref<16x128xf32, #tpu.memory_space<vmem>>, vector<16x128xf32>,
    return
  }
  func.func @transform_0(%arg0: i32) -> (i32, i32) {
    %c0_i32 = arith.constant 0 : i32
    %c0_i32_0 = arith.constant 0 : i32
    return %arg0, %c0_i32 : i32, i32
  }
  func.func @transform_1(%arg0: i32) -> (i32, i32) {
    %c0_i32 = arith.constant 0 : i32
    %c0_i32_0 = arith.constant 0 : i32
    return %arg0, %c0_i32 : i32, i32
  }
  func.func @transform_2(%arg0: i32) -> (i32, i32) {
    %c0_i32 = arith.constant 0 : i32
    %c0_i32_0 = arith.constant 0 : i32
    %c0_i32_1 = arith.constant 0 : i32
    return %c0_i32, %c0_i32_0 : i32, i32
  }
  func.func @transform_3(%arg0: i32) -> (i32, i32) {
    %c0_i32 = arith.constant 0 : i32
    %c0_i32_0 = arith.constant 0 : i32
    %c0_i32_1 = arith.constant 0 : i32
    return %c0_i32, %c0_i32_0 : i32, i32
  }
  func.func @transform_4(%arg0: i32) -> (i32, i32) {
    %c0_i32 = arith.constant 0 : i32
    %c0_i32_0 = arith.constant 0 : i32
    %c0_i32_1 = arith.constant 0 : i32
    return %c0_i32, %c0_i32_0 : i32, i32
  }
  func.func @transform_5(%arg0: i32) -> (i32, i32) {
    %c0_i32 = arith.constant 0 : i32
    %c0_i32_0 = arith.constant 0 : i32
    %c0_i32_1 = arith.constant 0 : i32
    return %c0_i32, %c0_i32_0 : i32, i32
  }
  func.func @transform_6(%arg0: i32) -> (i32, i32) {
    %c0_i32 = arith.constant 0 : i32
    %c0_i32_0 = arith.constant 0 : i32
    return %arg0, %c0_i32 : i32, i32
  }
}

</mosaic_0001>

<llo_original>
// kernel: tpu_custom_call.1
$region0: #{tpu_custom_call.1}
  #allocation0 [shape = 'u32[]', space=smem, size = 0x4, offset = 0x4, fixed_abs, tag = 'smem constant byte address 0x4 - core index']
  #allocation1 [shape = 'u32[144,128]{1,0:T(1,128)}', space=vmem, size = 0x12000, scoped, tag = 'internal scratch']
  %s0 = inlined_call_operand.hbm [shape: f32[16,32], index: 0, kind: input, shape index: {}]
  %s1 = inlined_call_operand.hbm [shape: f32[16,32], index: 1, kind: input, shape index: {}]
  %s2 = inlined_call_operand.hbm [shape: f32[32,384], index: 2, kind: input, shape index: {}]
  %s3 = inlined_call_operand.hbm [shape: f32[1,384], index: 3, kind: input, shape index: {}]
  %s4 = inlined_call_operand.hbm [shape: f32[32,384], index: 4, kind: input, shape index: {}]
  %s5 = inlined_call_operand.hbm [shape: f32[1,384], index: 5, kind: input, shape index: {}]
  %s6 = inlined_call_operand.hbm [shape: f32[16,128], index: 6, kind: output, shape index: {}]
  %s7 = sld [smem:[#allocation0]]
  $region58: #{tpu_custom_call.1} parent=0
    _
  %s9 = ssub.s32 1, %s7
  %s10 = scalar_select 0, %s9, %s7
  $region1: #{tpu_custom_call.1} parent=0
    #allocation2 [shape = 'u8[8192]{0}', space=vmem, size = 0x2000, scoped, tag = 'input window, operand 0, single buffered']
    #allocation3 [shape = 's32[1]{0}', space=sflag, size = 0x4, scoped, tag = 'scoped memory for tpu_custom_call.1']
    #allocation4 [shape = 's32[1]{0}', space=sflag, size = 0x4, scoped, tag = 'scoped memory for tpu_custom_call.1']
    #allocation5 [shape = 'u8[8192]{0}', space=vmem, size = 0x2000, scoped, tag = 'input window, operand 1, single buffered']
    #allocation6 [shape = 's32[1]{0}', space=sflag, size = 0x4, scoped, tag = 'scoped memory for tpu_custom_call.1']
    #allocation7 [shape = 'u8[49152]{0}', space=vmem, size = 0xc000, scoped, tag = 'input window, operand 2, single buffered']
    #allocation8 [shape = 'u8[1536]{0}', space=vmem, size = 0x800, scoped, tag = 'input window, operand 3, single buffered']
    #allocation9 [shape = 's32[1]{0}', space=sflag, size = 0x4, scoped, tag = 'scoped memory for tpu_custom_call.1']
    #allocation10 [shape = 'u8[49152]{0}', space=vmem, size = 0xc000, scoped, tag = 'input window, operand 4, single buffered']
    #allocation11 [shape = 'u8[1536]{0}', space=vmem, size = 0x800, scoped, tag = 'input window, operand 5, single buffered']
    #allocation12 [shape = 's32[1]{0}', space=sflag, size = 0x4, scoped, tag = 'scoped memory for tpu_custom_call.1']
    #allocation13 [shape = 'u8[8192]{0}', space=vmem, size = 0x2000, scoped, tag = 'output window, operand 0, single buffered']
    %11 = vsyncpa [#allocation3], 0
    %12 = vsyncpa [#allocation6], 0
    %13 = vsyncpa [#allocation9], 0
    %14 = vsyncpa [#allocation12], 0
    %15 = vsyncpa [#allocation4], 0
    // Predicated region
    $region2: #{tpu_custom_call.1} parent=1 // pred_check
      _
    $region3: #{tpu_custom_call.1} parent=1 // pred_check_branch
      %17 = sbr.rel (0) target = $region5
    $region4: #{tpu_custom_call.1} parent=1 // pred_region
      %s19 = ssub.s32 256, 256
      %20 = vsyncadd [#allocation3], %s19
      %s21 = sshll.u32 [#allocation2], 4
      %s22 = int_to_ptr.vmem [resolvable:$true] %s21
      %27 = dma.hbm_to_vmem [thread:$0]  %s0, 256, %s22, [#allocation3], 128, 128, 8
    $region5: #{tpu_custom_call.1} parent=1 // pred_fallthru
      _
    // Predicated region
    $region6: #{tpu_custom_call.1} parent=1 // pred_check
      _
    $region7: #{tpu_custom_call.1} parent=1 // pred_check_branch
      %29 = sbr.rel (0) target = $region9
    $region8: #{tpu_custom_call.1} parent=1 // pred_region
      %s31 = ssub.s32 256, 256
      %32 = vsyncadd [#allocation6], %s31
      %s33 = sshll.u32 [#allocation5], 4
      %s34 = int_to_ptr.vmem [resolvable:$true] %s33
      %39 = dma.hbm_to_vmem [thread:$0]  %s1, 256, %s34, [#allocation6], 128, 128, 8
    $region9: #{tpu_custom_call.1} parent=1 // pred_fallthru
      _
    // Predicated region
    $region10: #{tpu_custom_call.1} parent=1 // pred_check
      _
    $region11: #{tpu_custom_call.1} parent=1 // pred_check_branch
      %41 = sbr.rel (0) target = $region13
    $region12: #{tpu_custom_call.1} parent=1 // pred_region
      %s43 = ssub.s32 1536, 1536
      %44 = vsyncadd [#allocation6], %s43
      %s45 = sshll.u32 [#allocation7], 4
      %s46 = int_to_ptr.vmem [resolvable:$true] %s45
      %51 = dma.hbm_to_vmem [thread:$0]  %s2, 1536, %s46, [#allocation6], 384, 384, 24
    $region13: #{tpu_custom_call.1} parent=1 // pred_fallthru
      _
    // Predicated region
    $region14: #{tpu_custom_call.1} parent=1 // pred_check
      _
    $region15: #{tpu_custom_call.1} parent=1 // pred_check_branch
      %53 = sbr.rel (0) target = $region17
    $region16: #{tpu_custom_call.1} parent=1 // pred_region
      %s55 = ssub.s32 48, 48
      %56 = vsyncadd [#allocation9], %s55
      %s58 = sshll.u32 [#allocation8], 4
      %s59 = int_to_ptr.vmem [resolvable:$true] %s58
      %61 = dma.hbm_to_vmem [thread:$0]  %s3, 48, %s59, [#allocation9]
    $region17: #{tpu_custom_call.1} parent=1 // pred_fallthru
      _
    // Predicated region
    $region18: #{tpu_custom_call.1} parent=1 // pred_check
      _
    $region19: #{tpu_custom_call.1} parent=1 // pred_check_branch
      %63 = sbr.rel (0) target = $region21
    $region20: #{tpu_custom_call.1} parent=1 // pred_region
      %s65 = ssub.s32 1536, 1536
      %66 = vsyncadd [#allocation9], %s65
      %s67 = sshll.u32 [#allocation10], 4
      %s68 = int_to_ptr.vmem [resolvable:$true] %s67
      %73 = dma.hbm_to_vmem [thread:$0]  %s4, 1536, %s68, [#allocation9], 384, 384, 24
    $region21: #{tpu_custom_call.1} parent=1 // pred_fallthru
      _
    // Predicated region
    $region22: #{tpu_custom_call.1} parent=1 // pred_check
      _
    $region23: #{tpu_custom_call.1} parent=1 // pred_check_branch
      %75 = sbr.rel (0) target = $region25
    $region24: #{tpu_custom_call.1} parent=1 // pred_region
      %s77 = ssub.s32 48, 48
      %78 = vsyncadd [#allocation12], %s77
      %s80 = sshll.u32 [#allocation11], 4
      %s81 = int_to_ptr.vmem [resolvable:$true] %s80
      %83 = dma.hbm_to_vmem [thread:$0]  %s5, 48, %s81, [#allocation12]
    $region25: #{tpu_custom_call.1} parent=1 // pred_fallthru
      _
    // Predicated region
    $region26: #{tpu_custom_call.1} parent=1 // pred_check
      _
    $region27: #{tpu_custom_call.1} parent=1 // pred_check_branch
      %85 = sbr.rel (0) target = $region29
    $region28: #{tpu_custom_call.1} parent=1 // pred_region
      %86 = dma.done [#allocation3], 256
    $region29: #{tpu_custom_call.1} parent=1 // pred_fallthru
      _
    // Predicated region
    $region30: #{tpu_custom_call.1} parent=1 // pred_check
      _
    $region31: #{tpu_custom_call.1} parent=1 // pred_check_branch
      %88 = sbr.rel (0) target = $region33
    $region32: #{tpu_custom_call.1} parent=1 // pred_region
      %89 = dma.done [#allocation6], 256
    $region33: #{tpu_custom_call.1} parent=1 // pred_fallthru
      _
    // Predicated region
    $region34: #{tpu_custom_call.1} parent=1 // pred_check
      _
    $region35: #{tpu_custom_call.1} parent=1 // pred_check_branch
      %91 = sbr.rel (0) target = $region37
    $region36: #{tpu_custom_call.1} parent=1 // pred_region
      %92 = dma.done [#allocation6], 1536
    $region37: #{tpu_custom_call.1} parent=1 // pred_fallthru
      _
    // Predicated region
    $region38: #{tpu_custom_call.1} parent=1 // pred_check
      _
    $region39: #{tpu_custom_call.1} parent=1 // pred_check_branch
      %94 = sbr.rel (0) target = $region41
    $region40: #{tpu_custom_call.1} parent=1 // pred_region
      %95 = dma.done [#allocation9], 48
    $region41: #{tpu_custom_call.1} parent=1 // pred_fallthru
      _
    // Predicated region
    $region42: #{tpu_custom_call.1} parent=1 // pred_check
      _
    $region43: #{tpu_custom_call.1} parent=1 // pred_check_branch
      %97 = sbr.rel (0) target = $region45
    $region44: #{tpu_custom_call.1} parent=1 // pred_region
      %98 = dma.done [#allocation9], 1536
    $region45: #{tpu_custom_call.1} parent=1 // pred_fallthru
      _
    // Predicated region
    $region46: #{tpu_custom_call.1} parent=1 // pred_check
      _
    $region47: #{tpu_custom_call.1} parent=1 // pred_check_branch
      %100 = sbr.rel (0) target = $region49
    $region48: #{tpu_custom_call.1} parent=1 // pred_region
      %101 = dma.done [#allocation12], 48
    $region49: #{tpu_custom_call.1} parent=1 // pred_fallthru
      _
    %v102 = vld [vmem:[#allocation2] sm:$0xff]
    %v103 = vld [vmem:[#allocation2 + $0x8] sm:$0xff]
    %v104 = vld [vmem:[#allocation5] sm:$0xff]
    %v105 = vld [vmem:[#allocation5 + $0x8] sm:$0xff]
    %v106 = vld [vmem:[#allocation7] sm:$0xff]
    %v107 = vld [vmem:[#allocation7 + $0x8] sm:$0xff]
    %v108 = vld [vmem:[#allocation7 + $0x10] sm:$0xff]
    %v109 = vld [vmem:[#allocation7 + $0x18] sm:$0xff]
    %v110 = vld [vmem:[#allocation7 + $0x20] sm:$0xff]
    %v111 = vld [vmem:[#allocation7 + $0x28] sm:$0xff]
    %v112 = vld [vmem:[#allocation7 + $0x30] sm:$0xff]
    %v113 = vld [vmem:[#allocation7 + $0x38] sm:$0xff]
    %v114 = vld [vmem:[#allocation7 + $0x40] sm:$0xff]
    %v115 = vld [vmem:[#allocation7 + $0x48] sm:$0xff]
    %v116 = vld [vmem:[#allocation7 + $0x50] sm:$0xff]
    %v117 = vld [vmem:[#allocation7 + $0x58] sm:$0xff]
    %v118 = vld [vmem:[#allocation8] sm:$0x7]
    %v120 = vlaneseq
    %v121 = vshrl.u32 %v120, 7
    %v122 = vsub.s32 0, %v121
    %v123 = vrot.slane %v118, %v122
    %v124 = vlaneseq
    %v125 = vshrl.u32 %v124, 7
    %v126 = vsub.s32 1, %v125
    %v127 = vrot.slane %v118, %v126
    %v128 = vlaneseq
    %v129 = vshrl.u32 %v128, 7
    %v130 = vsub.s32 2, %v129
    %v131 = vrot.slane %v118, %v130
    %vm135 = vcmask 261120
    %v137 = vsel %vm135, %v102, 0
    %v140 = vsel %vm135, %v103, 0
    %142 = vmatprep.subr.mxu0 %v107
    %143 = vmatpush1.msra.mxu0 %v106
    %144 = vmatprep.subr.mxu0 %v110
    %145 = vmatpush1.msra.mxu0 %v109
    %146 = vmatprep.subr.mxu0 %v113
    %147 = vmatpush1.msra.mxu0 %v112
    %148 = vmatprep.subr.mxu0 %v116
    %149 = vmatpush1.msra.mxu0 %v115
    %150 = vmatprep.subr.mxu0 0.0
    %151 = vmatpush1.msra.mxu0 0.0
    %152 = vmatprep.subr.mxu0 0.0
    %153 = vmatpush1.msra.mxu0 0.0
    %154 = vmatprep.subr.mxu0 0.0
    %155 = vmatpush1.msra.mxu0 0.0
    %156 = vmatprep.subr.mxu0 0.0
    %157 = vmatpush1.msra.mxu0 0.0
    %158 = vmatprep.subr.mxu0 0.0
    %159 = vmatpush1.msra.mxu0 0.0
    %160 = vmatprep.subr.mxu0 0.0
    %161 = vmatpush1.msra.mxu0 0.0
    %162 = vmatprep.subr.mxu0 0.0
    %163 = vmatpush1.msra.mxu0 0.0
    %164 = vmatprep.subr.mxu0 0.0
    %165 = vmatpush1.msra.mxu0 0.0
    %166 = vmatprep.subr.mxu0 0.0
    %167 = vmatpush1.msra.mxu0 0.0
    %168 = vmatprep.subr.mxu0 0.0
    %169 = vmatpush1.msra.mxu0 0.0
    %170 = vmatprep.subr.mxu0 0.0
    %171 = vmatpush1.msra.mxu0 0.0
    %172 = vmatprep.subr.mxu0 0.0
    %173 = vmatpush1.msra.mxu0 0.0
    %174 = vmatprep.subr.mxu0 0.0
    %175 = vmatpush1.msra.mxu0 0.0
    %176 = vmatprep.subr.mxu0 0.0
    %177 = vmatpush1.msra.mxu0 0.0
    %178 = vmatprep.subr.mxu0 0.0
    %179 = vmatpush1.msra.mxu0 0.0
    %180 = vmatprep.subr.mxu0 0.0
    %181 = vmatpush1.msra.mxu0 0.0
    %182 = vmatprep.subr.mxu0 0.0
    %183 = vmatpush1.msra.mxu0 0.0
    %184 = vmatprep.subr.mxu0 0.0
    %185 = vmatpush1.msra.mxu0 0.0
    %186 = vmatprep.subr.mxu0 0.0
    %187 = vmatpush1.msra.mxu0 0.0
    %188 = vmatprep.subr.mxu0 0.0
    %189 = vmatpush1.msra.mxu0 0.0
    %190 = vmatprep.subr.mxu0 0.0
    %191 = vmatpush1.msra.mxu0 0.0
    %192 = vmatprep.subr.mxu0 0.0
    %193 = vmatpush1.msra.mxu0 0.0
    %194 = vmatprep.subr.mxu0 0.0
    %195 = vmatpush1.msra.mxu0 0.0
    %196 = vmatprep.subr.mxu0 0.0
    %197 = vmatpush1.msra.mxu0 0.0
    %198 = vmatprep.subr.mxu0 0.0
    %199 = vmatpush1.msra.mxu0 0.0
    %200 = vmatprep.subr.mxu0 0.0
    %201 = vmatpush1.msra.mxu0 0.0
    %202 = vmatprep.subr.mxu0 0.0
    %203 = vmatpush1.msra.mxu0 0.0
    %204 = vmatprep.subr.mxu0 0.0
    %205 = vmatpush1.msra.mxu0 0.0
    %206 = vmatprep.mubr.f32.mxu0 0.0
    %207 = vmatmul.mubr.f32.gmra.mrb[0].mxu0 %v137
    %v208 = vpop.f32.mrb[0].mxu0
    %v209 = vadd.f32 %v123, %v208
    %v210 = vpop.f32.mrb[0].mxu0
    %v211 = vadd.f32 %v127, %v210
    %212 = vmatprep.mubr.f32.mxu0 0.0
    %213 = vmatmul.mubr.f32.gmra.mrb[0].mxu0 %v140
    %v214 = vpop.f32.mrb[0].mxu0
    %v215 = vadd.f32 %v123, %v214
    %v216 = vpop.f32.mrb[0].mxu0
    %v217 = vadd.f32 %v127, %v216
    %218 = vdwg.mxu0
    %219 = vmatprep.subr.mxu0 0.0
    %220 = vmatpush1.msra.mxu0 %v108
    %221 = vmatprep.subr.mxu0 0.0
    %222 = vmatpush1.msra.mxu0 %v111
    %223 = vmatprep.subr.mxu0 0.0
    %224 = vmatpush1.msra.mxu0 %v114
    %225 = vmatprep.subr.mxu0 0.0
    %226 = vmatpush1.msra.mxu0 %v117
    %227 = vmatprep.subr.mxu0 0.0
    %228 = vmatpush1.msra.mxu0 0.0
    %229 = vmatprep.subr.mxu0 0.0
    %230 = vmatpush1.msra.mxu0 0.0
    %231 = vmatprep.subr.mxu0 0.0
    %232 = vmatpush1.msra.mxu0 0.0
    %233 = vmatprep.subr.mxu0 0.0
    %234 = vmatpush1.msra.mxu0 0.0
    %235 = vmatprep.subr.mxu0 0.0
    %236 = vmatpush1.msra.mxu0 0.0
    %237 = vmatprep.subr.mxu0 0.0
    %238 = vmatpush1.msra.mxu0 0.0
    %239 = vmatprep.subr.mxu0 0.0
    %240 = vmatpush1.msra.mxu0 0.0
    %241 = vmatprep.subr.mxu0 0.0
    %242 = vmatpush1.msra.mxu0 0.0
    %243 = vmatprep.subr.mxu0 0.0
    %244 = vmatpush1.msra.mxu0 0.0
    %245 = vmatprep.subr.mxu0 0.0
    %246 = vmatpush1.msra.mxu0 0.0
    %247 = vmatprep.subr.mxu0 0.0
    %248 = vmatpush1.msra.mxu0 0.0
    %249 = vmatprep.subr.mxu0 0.0
    %250 = vmatpush1.msra.mxu0 0.0
    %251 = vmatprep.subr.mxu0 0.0
    %252 = vmatpush1.msra.mxu0 0.0
    %253 = vmatprep.subr.mxu0 0.0
    %254 = vmatpush1.msra.mxu0 0.0
    %255 = vmatprep.subr.mxu0 0.0
    %256 = vmatpush1.msra.mxu0 0.0
    %257 = vmatprep.subr.mxu0 0.0
    %258 = vmatpush1.msra.mxu0 0.0
    %259 = vmatprep.subr.mxu0 0.0
    %260 = vmatpush1.msra.mxu0 0.0
    %261 = vmatprep.subr.mxu0 0.0
    %262 = vmatpush1.msra.mxu0 0.0
    %263 = vmatprep.subr.mxu0 0.0
    %264 = vmatpush1.msra.mxu0 0.0
    %265 = vmatprep.subr.mxu0 0.0
    %266 = vmatpush1.msra.mxu0 0.0
    %267 = vmatprep.subr.mxu0 0.0
    %268 = vmatpush1.msra.mxu0 0.0
    %269 = vmatprep.subr.mxu0 0.0
    %270 = vmatpush1.msra.mxu0 0.0
    %271 = vmatprep.subr.mxu0 0.0
    %272 = vmatpush1.msra.mxu0 0.0
    %273 = vmatprep.subr.mxu0 0.0
    %274 = vmatpush1.msra.mxu0 0.0
    %275 = vmatprep.subr.mxu0 0.0
    %276 = vmatpush1.msra.mxu0 0.0
    %277 = vmatprep.subr.mxu0 0.0
    %278 = vmatpush1.msra.mxu0 0.0
    %279 = vmatprep.subr.mxu0 0.0
    %280 = vmatpush1.msra.mxu0 0.0
    %281 = vmatprep.subr.mxu0 0.0
    %282 = vmatpush1.msra.mxu0 0.0
    %283 = vmatprep.mubr.f32.mxu0 0.0
    %284 = vmatmul.mubr.f32.gmra.mrb[0].mxu0 %v137
    %v285 = vpop.f32.mrb[0].mxu0
    %v286 = vadd.f32 %v131, %v285
    %v287 = vpop.f32.mrb[0].mxu0
    %288 = vmatprep.mubr.f32.mxu0 0.0
    %289 = vmatmul.mubr.f32.gmra.mrb[0].mxu0 %v140
    %v290 = vpop.f32.mrb[0].mxu0
    %v291 = vadd.f32 %v131, %v290
    %v292 = vpop.f32.mrb[0].mxu0
    %293 = vdwg.mxu0
    %v294 = vtanh.pop %v209
    %v295 = vtanh.pop %v211
    %v296 = vtanh.pop %v286
    %v297 = vtanh.pop %v215
    %v298 = vtanh.pop %v217
    %v299 = vtanh.pop %v291
    %v300 = vld [vmem:[#allocation10] sm:$0xff]
    %v301 = vld [vmem:[#allocation10 + $0x8] sm:$0xff]
    %v302 = vld [vmem:[#allocation10 + $0x10] sm:$0xff]
    %v303 = vld [vmem:[#allocation10 + $0x18] sm:$0xff]
    %v304 = vld [vmem:[#allocation10 + $0x20] sm:$0xff]
    %v305 = vld [vmem:[#allocation10 + $0x28] sm:$0xff]
    %v306 = vld [vmem:[#allocation10 + $0x30] sm:$0xff]
    %v307 = vld [vmem:[#allocation10 + $0x38] sm:$0xff]
    %v308 = vld [vmem:[#allocation10 + $0x40] sm:$0xff]
    %v309 = vld [vmem:[#allocation10 + $0x48] sm:$0xff]
    %v310 = vld [vmem:[#allocation10 + $0x50] sm:$0xff]
    %v311 = vld [vmem:[#allocation10 + $0x58] sm:$0xff]
    %v312 = vld [vmem:[#allocation11] sm:$0x7]
    %v314 = vlaneseq
    %v315 = vshrl.u32 %v314, 7
    %v316 = vsub.s32 0, %v315
    %v317 = vrot.slane %v312, %v316
    %v318 = vlaneseq
    %v319 = vshrl.u32 %v318, 7
    %v320 = vsub.s32 1, %v319
    %v321 = vrot.slane %v312, %v320
    %v322 = vlaneseq
    %v323 = vshrl.u32 %v322, 7
    %v324 = vsub.s32 2, %v323
    %v325 = vrot.slane %v312, %v324
    %v330 = vsel %vm135, %v104, 0
    %v333 = vsel %vm135, %v105, 0
    %335 = vmatprep.subr.mxu0 %v301
    %336 = vmatpush1.msra.mxu0 %v300
    %337 = vmatprep.subr.mxu0 %v304
    %338 = vmatpush1.msra.mxu0 %v303
    %339 = vmatprep.subr.mxu0 %v307
    %340 = vmatpush1.msra.mxu0 %v306
    %341 = vmatprep.subr.mxu0 %v310
    %342 = vmatpush1.msra.mxu0 %v309
    %343 = vmatprep.subr.mxu0 0.0
    %344 = vmatpush1.msra.mxu0 0.0
    %345 = vmatprep.subr.mxu0 0.0
    %346 = vmatpush1.msra.mxu0 0.0
    %347 = vmatprep.subr.mxu0 0.0
    %348 = vmatpush1.msra.mxu0 0.0
    %349 = vmatprep.subr.mxu0 0.0
    %350 = vmatpush1.msra.mxu0 0.0
    %351 = vmatprep.subr.mxu0 0.0
    %352 = vmatpush1.msra.mxu0 0.0
    %353 = vmatprep.subr.mxu0 0.0
    %354 = vmatpush1.msra.mxu0 0.0
    %355 = vmatprep.subr.mxu0 0.0
    %356 = vmatpush1.msra.mxu0 0.0
    %357 = vmatprep.subr.mxu0 0.0
    %358 = vmatpush1.msra.mxu0 0.0
    %359 = vmatprep.subr.mxu0 0.0
    %360 = vmatpush1.msra.mxu0 0.0
    %361 = vmatprep.subr.mxu0 0.0
    %362 = vmatpush1.msra.mxu0 0.0
    %363 = vmatprep.subr.mxu0 0.0
    %364 = vmatpush1.msra.mxu0 0.0
    %365 = vmatprep.subr.mxu0 0.0
    %366 = vmatpush1.msra.mxu0 0.0
    %367 = vmatprep.subr.mxu0 0.0
    %368 = vmatpush1.msra.mxu0 0.0
    %369 = vmatprep.subr.mxu0 0.0
    %370 = vmatpush1.msra.mxu0 0.0
    %371 = vmatprep.subr.mxu0 0.0
    %372 = vmatpush1.msra.mxu0 0.0
    %373 = vmatprep.subr.mxu0 0.0
    %374 = vmatpush1.msra.mxu0 0.0
    %375 = vmatprep.subr.mxu0 0.0
    %376 = vmatpush1.msra.mxu0 0.0
    %377 = vmatprep.subr.mxu0 0.0
    %378 = vmatpush1.msra.mxu0 0.0
    %379 = vmatprep.subr.mxu0 0.0
    %380 = vmatpush1.msra.mxu0 0.0
    %381 = vmatprep.subr.mxu0 0.0
    %382 = vmatpush1.msra.mxu0 0.0
    %383 = vmatprep.subr.mxu0 0.0
    %384 = vmatpush1.msra.mxu0 0.0
    %385 = vmatprep.subr.mxu0 0.0
    %386 = vmatpush1.msra.mxu0 0.0
    %387 = vmatprep.subr.mxu0 0.0
    %388 = vmatpush1.msra.mxu0 0.0
    %389 = vmatprep.subr.mxu0 0.0
    %390 = vmatpush1.msra.mxu0 0.0
    %391 = vmatprep.subr.mxu0 0.0
    %392 = vmatpush1.msra.mxu0 0.0
    %393 = vmatprep.subr.mxu0 0.0
    %394 = vmatpush1.msra.mxu0 0.0
    %395 = vmatprep.subr.mxu0 0.0
    %396 = vmatpush1.msra.mxu0 0.0
    %397 = vmatprep.subr.mxu0 0.0
    %398 = vmatpush1.msra.mxu0 0.0
    %399 = vmatprep.mubr.f32.mxu0 0.0
    %400 = vmatmul.mubr.f32.gmra.mrb[0].mxu0 %v330
    %v401 = vpop.f32.mrb[0].mxu0
    %v402 = vadd.f32 %v317, %v401
    %v403 = vpop.f32.mrb[0].mxu0
    %v404 = vadd.f32 %v321, %v403
    %405 = vmatprep.mubr.f32.mxu0 0.0
    %406 = vmatmul.mubr.f32.gmra.mrb[0].mxu0 %v333
    %v407 = vpop.f32.mrb[0].mxu0
    %v408 = vadd.f32 %v317, %v407
    %v409 = vpop.f32.mrb[0].mxu0
    %v410 = vadd.f32 %v321, %v409
    %411 = vdwg.mxu0
    %412 = vmatprep.subr.mxu0 0.0
    %413 = vmatpush1.msra.mxu0 %v302
    %414 = vmatprep.subr.mxu0 0.0
    %415 = vmatpush1.msra.mxu0 %v305
    %416 = vmatprep.subr.mxu0 0.0
    %417 = vmatpush1.msra.mxu0 %v308
    %418 = vmatprep.subr.mxu0 0.0
    %419 = vmatpush1.msra.mxu0 %v311
    %420 = vmatprep.subr.mxu0 0.0
    %421 = vmatpush1.msra.mxu0 0.0
    %422 = vmatprep.subr.mxu0 0.0
    %423 = vmatpush1.msra.mxu0 0.0
    %424 = vmatprep.subr.mxu0 0.0
    %425 = vmatpush1.msra.mxu0 0.0
    %426 = vmatprep.subr.mxu0 0.0
    %427 = vmatpush1.msra.mxu0 0.0
    %428 = vmatprep.subr.mxu0 0.0
    %429 = vmatpush1.msra.mxu0 0.0
    %430 = vmatprep.subr.mxu0 0.0
    %431 = vmatpush1.msra.mxu0 0.0
    %432 = vmatprep.subr.mxu0 0.0
    %433 = vmatpush1.msra.mxu0 0.0
    %434 = vmatprep.subr.mxu0 0.0
    %435 = vmatpush1.msra.mxu0 0.0
    %436 = vmatprep.subr.mxu0 0.0
    %437 = vmatpush1.msra.mxu0 0.0
    %438 = vmatprep.subr.mxu0 0.0
    %439 = vmatpush1.msra.mxu0 0.0
    %440 = vmatprep.subr.mxu0 0.0
    %441 = vmatpush1.msra.mxu0 0.0
    %442 = vmatprep.subr.mxu0 0.0
    %443 = vmatpush1.msra.mxu0 0.0
    %444 = vmatprep.subr.mxu0 0.0
    %445 = vmatpush1.msra.mxu0 0.0
    %446 = vmatprep.subr.mxu0 0.0
    %447 = vmatpush1.msra.mxu0 0.0
    %448 = vmatprep.subr.mxu0 0.0
    %449 = vmatpush1.msra.mxu0 0.0
    %450 = vmatprep.subr.mxu0 0.0
    %451 = vmatpush1.msra.mxu0 0.0
    %452 = vmatprep.subr.mxu0 0.0
    %453 = vmatpush1.msra.mxu0 0.0
    %454 = vmatprep.subr.mxu0 0.0
    %455 = vmatpush1.msra.mxu0 0.0
    %456 = vmatprep.subr.mxu0 0.0
    %457 = vmatpush1.msra.mxu0 0.0
    %458 = vmatprep.subr.mxu0 0.0
    %459 = vmatpush1.msra.mxu0 0.0
    %460 = vmatprep.subr.mxu0 0.0
    %461 = vmatpush1.msra.mxu0 0.0
    %462 = vmatprep.subr.mxu0 0.0
    %463 = vmatpush1.msra.mxu0 0.0
    %464 = vmatprep.subr.mxu0 0.0
    %465 = vmatpush1.msra.mxu0 0.0
    %466 = vmatprep.subr.mxu0 0.0
    %467 = vmatpush1.msra.mxu0 0.0
    %468 = vmatprep.subr.mxu0 0.0
    %469 = vmatpush1.msra.mxu0 0.0
    %470 = vmatprep.subr.mxu0 0.0
    %471 = vmatpush1.msra.mxu0 0.0
    %472 = vmatprep.subr.mxu0 0.0
    %473 = vmatpush1.msra.mxu0 0.0
    %474 = vmatprep.subr.mxu0 0.0
    %475 = vmatpush1.msra.mxu0 0.0
    %476 = vmatprep.mubr.f32.mxu0 0.0
    %477 = vmatmul.mubr.f32.gmra.mrb[0].mxu0 %v330
    %v478 = vpop.f32.mrb[0].mxu0
    %v479 = vadd.f32 %v325, %v478
    %v480 = vpop.f32.mrb[0].mxu0
    %481 = vmatprep.mubr.f32.mxu0 0.0
    %482 = vmatmul.mubr.f32.gmra.mrb[0].mxu0 %v333
    %v483 = vpop.f32.mrb[0].mxu0
    %v484 = vadd.f32 %v325, %v483
    %v485 = vpop.f32.mrb[0].mxu0
    %486 = vdwg.mxu0
    %v487 = vtanh.pop %v402
    %v488 = vtanh.pop %v404
    %v489 = vtanh.pop %v479
    %v490 = vtanh.pop %v408
    %v491 = vtanh.pop %v410
    %v492 = vtanh.pop %v484
    %v493 = vmul.f32 %v294, %v487
    %v494 = vmul.f32 %v295, %v488
    %v495 = vmul.f32 %v296, %v489
    %v496 = vmul.f32 %v297, %v490
    %v497 = vmul.f32 %v298, %v491
    %v498 = vmul.f32 %v299, %v492
    %v499 = vadd.f32 %v493, %v494
    %v500 = vadd.f32 %v496, %v497
    %v501 = vadd.f32 %v499, %v495
    %v502 = vadd.f32 %v500, %v498
    %v503 = vtanh.pop %v501
    %v504 = vtanh.pop %v502
    %505 = vst [vmem:[#allocation13] sm:$0xff] %v503
    %506 = vst [vmem:[#allocation13 + $0x8] sm:$0xff] %v504
    // Predicated region
    $region50: #{tpu_custom_call.1} parent=1 // pred_check
      _
    $region51: #{tpu_custom_call.1} parent=1 // pred_check_branch
      %508 = sbr.rel (0) target = $region53
    $region52: #{tpu_custom_call.1} parent=1 // pred_region
      %s510 = ssub.s32 256, 256
      %511 = vsyncadd [#allocation4], %s510
      %s512 = sshll.u32 [#allocation13], 4
      %s513 = int_to_ptr.vmem [resolvable:$true] %s512
      %518 = dma.vmem_to_hbm [thread:$0]  %s513, 256, %s6, [#allocation4], 128, 128, 8
    $region53: #{tpu_custom_call.1} parent=1 // pred_fallthru
      _
    // Predicated region
    $region54: #{tpu_custom_call.1} parent=1 // pred_check
      _
    $region55: #{tpu_custom_call.1} parent=1 // pred_check_branch
      %520 = sbr.rel (0) target = $region57
    $region56: #{tpu_custom_call.1} parent=1 // pred_region
      %521 = dma.done [#allocation4], 256
    $region57: #{tpu_custom_call.1} parent=1 // pred_fallthru
      _
    %522 = vsyncpa [#allocation3], 1
    %523 = vsyncpa [#allocation6], 1
    %524 = vsyncpa [#allocation9], 1
    %525 = vsyncpa [#allocation12], 1
    %526 = vsyncpa [#allocation4], 1

</llo_original>
